<compile_context>
chip_gen: v7x
topology: tpu7x:2x2x1
jax: 0.10.0
libtpu: 0.0.40
codegen_flags: <defaults>
</compile_context>

<pallas_src>
import jax
import jax.numpy as jnp
from jax.experimental import pallas as pl
from jax.experimental.pallas import tpu as pltpu

NEG_BIG = -10000.0       # matches `scores[~mask] = float(-10000)` in the module
LEAKY_SLOPE = 0.01       # nn.LeakyReLU default negative_slope


def _attn_bag_kernel(x_ref, mask_ref,
                     w1_ref, b1_ref, w2_ref, b2_ref, w3_ref, b3_ref,
                     out_ref):
    x = x_ref[0]          # (T, D) embeddings for this batch row
    m = mask_ref[0]       # (T, 1) float mask (1.0 = real token, 0.0 = pad)

    def layer(h, w_ref, b_ref):
        y = (jnp.dot(h, w_ref[...], preferred_element_type=jnp.float32)
             + b_ref[...])
        return jnp.where(y > 0, y, LEAKY_SLOPE * y)      # LeakyReLU(0.01)

    x = layer(x, w1_ref, b1_ref)
    x = layer(x, w2_ref, b2_ref)
    x = layer(x, w3_ref, b3_ref)                          # (T, D)

    d = x.shape[1]
    scale = 1.0 / (d ** 0.5)

    # context = x.sum(T) / (mask.sum(T) + 1e-5)   (numerator unmasked, as in torch)
    cnt = jnp.sum(m, axis=0, keepdims=True)               # (1, 1)
    context = jnp.sum(x, axis=0, keepdims=True) / (cnt + 1e-5)   # (1, D)

    # DotScore + masked softmax over T (AttentionAvg)
    scores = jnp.sum(x * context, axis=1, keepdims=True) * scale  # (T, 1)
    scores = jnp.where(m > 0, scores, NEG_BIG)
    smax = jnp.max(scores, axis=0, keepdims=True)          # (1, 1)
    e = jnp.exp(scores - smax)
    weights = e / jnp.sum(e, axis=0, keepdims=True)        # (T, 1)

    out = jnp.sum(x * weights, axis=0, keepdims=True)      # (1, D)
    out_ref[0] = out.astype(out_ref.dtype)


def embedding_attention_bag(tokens, params, padding_idx=None):
    """tokens: (B, T) int32 -> (B, D) float32 attention-bag embedding."""
    emb_table = params["embedding"]                        # (V, D)
    B, T = tokens.shape
    D = emb_table.shape[1]

    # Glue: embedding gather directly in the layout the kernel consumes.
    x = jnp.take(emb_table, tokens, axis=0)                # (B, T, D) f32
    if padding_idx is not None:
        mask = tokens != padding_idx
    else:
        mask = jnp.ones((B, T), dtype=bool)
    mask_f = mask.astype(jnp.float32)[:, :, None]          # (B, T, 1)

    weight_spec = pl.BlockSpec((D, D), lambda b: (0, 0))   # resident weights
    bias_spec = pl.BlockSpec((1, D), lambda b: (0, 0))

    grid_spec = pltpu.PrefetchScalarGridSpec(
        num_scalar_prefetch=0,
        grid=(B,),                                         # one step per batch row
        in_specs=[
            pl.BlockSpec((1, T, D), lambda b: (b, 0, 0)),  # per-row embeddings
            pl.BlockSpec((1, T, 1), lambda b: (b, 0, 0)),  # per-row mask
            weight_spec, bias_spec,                        # layer 1
            weight_spec, bias_spec,                        # layer 2
            weight_spec, bias_spec,                        # layer 3
        ],
        out_specs=pl.BlockSpec((1, 1, D), lambda b: (b, 0, 0)),
    )

    out = pl.pallas_call(
        _attn_bag_kernel,
        out_shape=jax.ShapeDtypeStruct((B, 1, D), jnp.float32),
        grid_spec=grid_spec,
        compiler_params=pltpu.CompilerParams(
            dimension_semantics=("parallel",)),            # batch rows independent
    )(x, mask_f,
      params["w1_t"], params["b1"],
      params["w2_t"], params["b2"],
      params["w3_t"], params["b3"])
    return out[:, 0, :]                                    # (B, D)


def make_params(key, vocab_size, D, n_layers=3):
    ks = jax.random.split(key, 1 + 2 * n_layers)
    params = {"embedding": jax.random.normal(ks[0], (vocab_size, D), jnp.float32)}
    bound = 1.0 / (D ** 0.5)
    for i in range(n_layers):
        w = jax.random.uniform(ks[1 + 2 * i], (D, D), jnp.float32, -bound, bound)
        b = jax.random.uniform(ks[2 + 2 * i], (D,), jnp.float32, -bound, bound)
        params[f"w{i + 1}_t"] = w.T        # (D_in, D_out) so kernel does x @ W^T
        params[f"b{i + 1}"] = b[None, :]   # (1, D)
    return params


def embedding_attention_bag_ref(tokens, params, padding_idx=None):
    """Pure-JAX reference mirroring the torch module (for validation)."""
    hp = jax.lax.Precision.HIGHEST
    x = jnp.take(params["embedding"], tokens, axis=0)      # (B, T, D)
    for i in (1, 2, 3):
        x = jnp.einsum("btd,de->bte", x, params[f"w{i}_t"],
                       precision=hp) + params[f"b{i}"]
        x = jnp.where(x > 0, x, LEAKY_SLOPE * x)
    if padding_idx is not None:
        mask = tokens != padding_idx
    else:
        mask = jnp.ones(tokens.shape, dtype=bool)
    D = x.shape[-1]
    cnt = mask.sum(axis=1, keepdims=True).astype(jnp.float32)
    context = x.sum(axis=1) / (cnt + 1e-5)                 # (B, D)
    scores = jnp.einsum("btd,bd->bt", x, context, precision=hp) * (1.0 / (D ** 0.5))
    scores = jnp.where(mask, scores, NEG_BIG)
    weights = jax.nn.softmax(scores, axis=1)
    return jnp.einsum("bt,btd->bd", weights, x, precision=hp)


if __name__ == "__main__":
    vocab_size = 50
    D = 32
    B, T = 2, 8

    key = jax.random.PRNGKey(0)
    k_params, k_tokens = jax.random.split(key)
    params = make_params(k_params, vocab_size, D)
    tokens = jax.random.randint(k_tokens, (B, T), 0, vocab_size, jnp.int32)

    out = embedding_attention_bag(tokens, params, padding_idx=None)
    out = jax.block_until_ready(out)

    ref = embedding_attention_bag_ref(tokens, params, padding_idx=None)
    assert out.shape == (B, D)
    err = jnp.max(jnp.abs(out - ref))
    assert jnp.allclose(out, ref, rtol=1e-4, atol=1e-4), f"max abs err {err}"

    print("KERNEL_OK")
</pallas_src>

<mosaic_0001>
module attributes {stable_mosaic.version = 11 : i64} {
  func.func @_attn_bag_kernel(%arg0: i32, %arg1: memref<1x8x32xf32, #tpu.memory_space<vmem>>, %arg2: memref<1x8x1xf32, #tpu.memory_space<vmem>>, %arg3: memref<32x32xf32, #tpu.memory_space<vmem>>, %arg4: memref<1x32xf32, #tpu.memory_space<vmem>>, %arg5: memref<32x32xf32, #tpu.memory_space<vmem>>, %arg6: memref<1x32xf32, #tpu.memory_space<vmem>>, %arg7: memref<32x32xf32, #tpu.memory_space<vmem>>, %arg8: memref<1x32xf32, #tpu.memory_space<vmem>>, %arg9: memref<1x1x32xf32, #tpu.memory_space<vmem>>) attributes {dimension_semantics = [#tpu.dimension_semantics<parallel>], iteration_bounds = array<i64: 2>, scalar_prefetch = 0 : i64, scratch_operands = 0 : i64, tpu.core_type = #tpu.core_type<tc>, window_params = [{transform_indices = @transform_0, window_bounds = array<i64: 1, 8, 32>}, {transform_indices = @transform_1, window_bounds = array<i64: 1, 8, 1>}, {pipeline_mode = #tpu.pipeline_mode<synchronous>, transform_indices = @transform_2, window_bounds = array<i64: 32, 32>}, {pipeline_mode = #tpu.pipeline_mode<synchronous>, transform_indices = @transform_3, window_bounds = array<i64: 1, 32>}, {pipeline_mode = #tpu.pipeline_mode<synchronous>, transform_indices = @transform_4, window_bounds = array<i64: 32, 32>}, {pipeline_mode = #tpu.pipeline_mode<synchronous>, transform_indices = @transform_5, window_bounds = array<i64: 1, 32>}, {pipeline_mode = #tpu.pipeline_mode<synchronous>, transform_indices = @transform_6, window_bounds = array<i64: 32, 32>}, {pipeline_mode = #tpu.pipeline_mode<synchronous>, transform_indices = @transform_7, window_bounds = array<i64: 1, 32>}, {transform_indices = @transform_8, window_bounds = array<i64: 1, 1, 32>}]} {
    %c0 = arith.constant 0 : index
    %c0_0 = arith.constant 0 : index
    %c0_1 = arith.constant 0 : index
    %0 = vector.load %arg1[%c0, %c0_0, %c0_1] : memref<1x8x32xf32, #tpu.memory_space<vmem>>, vector<1x8x32xf32>
    %1 = vector.shape_cast %0 : vector<1x8x32xf32> to vector<8x32xf32>
    %c0_2 = arith.constant 0 : index
    %c0_3 = arith.constant 0 : index
    %c0_4 = arith.constant 0 : index
    %2 = vector.load %arg2[%c0_2, %c0_3, %c0_4] : memref<1x8x1xf32, #tpu.memory_space<vmem>>, vector<1x8x1xf32>
    %3 = vector.shape_cast %2 : vector<1x8x1xf32> to vector<8x1xf32>
    %c0_5 = arith.constant 0 : index
    %c0_6 = arith.constant 0 : index
    %4 = vector.load %arg3[%c0_5, %c0_6] : memref<32x32xf32, #tpu.memory_space<vmem>>, vector<32x32xf32>
    %cst = arith.constant dense<0.000000e+00> : vector<8x32xf32>
    %5 = tpu.matmul %1, %4, %cst {dimension_numbers = #tpu.dot_dimension_numbers<[1], [0], [0], [1], [0, 0, 1, 1], [], []>} : vector<8x32xf32>, vector<32x32xf32>, vector<8x32xf32> -> vector<8x32xf32>
    %c0_7 = arith.constant 0 : index
    %c0_8 = arith.constant 0 : index
    %6 = vector.load %arg4[%c0_7, %c0_8] : memref<1x32xf32, #tpu.memory_space<vmem>>, vector<1x32xf32>
    %7 = vector.broadcast %6 : vector<1x32xf32> to vector<8x32xf32>
    %8 = arith.addf %5, %7 : vector<8x32xf32>
    %cst_9 = arith.constant 0.000000e+00 : f32
    %9 = vector.broadcast %cst_9 : f32 to vector<8x32xf32>
    %10 = arith.cmpf ogt, %8, %9 : vector<8x32xf32>
    %cst_10 = arith.constant 0.00999999977 : f32
    %11 = vector.broadcast %cst_10 : f32 to vector<8x32xf32>
    %12 = arith.mulf %11, %8 : vector<8x32xf32>
    %13 = arith.select %10, %8, %12 : vector<8x32xi1>, vector<8x32xf32>
    %c0_11 = arith.constant 0 : index
    %c0_12 = arith.constant 0 : index
    %14 = vector.load %arg5[%c0_11, %c0_12] : memref<32x32xf32, #tpu.memory_space<vmem>>, vector<32x32xf32>
    %cst_13 = arith.constant dense<0.000000e+00> : vector<8x32xf32>
    %15 = tpu.matmul %13, %14, %cst_13 {dimension_numbers = #tpu.dot_dimension_numbers<[1], [0], [0], [1], [0, 0, 1, 1], [], []>} : vector<8x32xf32>, vector<32x32xf32>, vector<8x32xf32> -> vector<8x32xf32>
    %c0_14 = arith.constant 0 : index
    %c0_15 = arith.constant 0 : index
    %16 = vector.load %arg6[%c0_14, %c0_15] : memref<1x32xf32, #tpu.memory_space<vmem>>, vector<1x32xf32>
    %17 = vector.broadcast %16 : vector<1x32xf32> to vector<8x32xf32>
    %18 = arith.addf %15, %17 : vector<8x32xf32>
    %cst_16 = arith.constant 0.000000e+00 : f32
    %19 = vector.broadcast %cst_16 : f32 to vector<8x32xf32>
    %20 = arith.cmpf ogt, %18, %19 : vector<8x32xf32>
    %cst_17 = arith.constant 0.00999999977 : f32
    %21 = vector.broadcast %cst_17 : f32 to vector<8x32xf32>
    %22 = arith.mulf %21, %18 : vector<8x32xf32>
    %23 = arith.select %20, %18, %22 : vector<8x32xi1>, vector<8x32xf32>
    %c0_18 = arith.constant 0 : index
    %c0_19 = arith.constant 0 : index
    %24 = vector.load %arg7[%c0_18, %c0_19] : memref<32x32xf32, #tpu.memory_space<vmem>>, vector<32x32xf32>
    %cst_20 = arith.constant dense<0.000000e+00> : vector<8x32xf32>
    %25 = tpu.matmul %23, %24, %cst_20 {dimension_numbers = #tpu.dot_dimension_numbers<[1], [0], [0], [1], [0, 0, 1, 1], [], []>} : vector<8x32xf32>, vector<32x32xf32>, vector<8x32xf32> -> vector<8x32xf32>
    %c0_21 = arith.constant 0 : index
    %c0_22 = arith.constant 0 : index
    %26 = vector.load %arg8[%c0_21, %c0_22] : memref<1x32xf32, #tpu.memory_space<vmem>>, vector<1x32xf32>
    %27 = vector.broadcast %26 : vector<1x32xf32> to vector<8x32xf32>
    %28 = arith.addf %25, %27 : vector<8x32xf32>
    %cst_23 = arith.constant 0.000000e+00 : f32
    %29 = vector.broadcast %cst_23 : f32 to vector<8x32xf32>
    %30 = arith.cmpf ogt, %28, %29 : vector<8x32xf32>
    %cst_24 = arith.constant 0.00999999977 : f32
    %31 = vector.broadcast %cst_24 : f32 to vector<8x32xf32>
    %32 = arith.mulf %31, %28 : vector<8x32xf32>
    %33 = arith.select %30, %28, %32 : vector<8x32xi1>, vector<8x32xf32>
    %cst_25 = arith.constant dense<0.000000e+00> : vector<1xf32>
    %34 = vector.multi_reduction <add>, %3, %cst_25 [0] : vector<8x1xf32> to vector<1xf32>
    %35 = vector.shape_cast %34 : vector<1xf32> to vector<1x1xf32>
    %cst_26 = arith.constant dense<0.000000e+00> : vector<32xf32>
    %36 = vector.multi_reduction <add>, %33, %cst_26 [0] : vector<8x32xf32> to vector<32xf32>
    %37 = vector.shape_cast %36 : vector<32xf32> to vector<1x32xf32>
    %cst_27 = arith.constant 9.99999974E-6 : f32
    %38 = vector.broadcast %cst_27 : f32 to vector<1x1xf32>
    %39 = arith.addf %35, %38 : vector<1x1xf32>
    %40 = vector.broadcast %39 : vector<1x1xf32> to vector<1x32xf32>
    %41 = arith.divf %37, %40 : vector<1x32xf32>
    %42 = vector.broadcast %41 : vector<1x32xf32> to vector<8x32xf32>
    %43 = arith.mulf %33, %42 : vector<8x32xf32>
    %cst_28 = arith.constant dense<0.000000e+00> : vector<8xf32>
    %44 = vector.multi_reduction <add>, %43, %cst_28 [1] : vector<8x32xf32> to vector<8xf32>
    %45 = vector.shape_cast %44 : vector<8xf32> to vector<8x1xf32>
    %cst_29 = arith.constant 0.176776692 : f32
    %46 = vector.broadcast %cst_29 : f32 to vector<8x1xf32>
    %47 = arith.mulf %45, %46 : vector<8x1xf32>
    %cst_30 = arith.constant 0.000000e+00 : f32
    %48 = vector.broadcast %cst_30 : f32 to vector<8x1xf32>
    %49 = arith.cmpf ogt, %3, %48 : vector<8x1xf32>
    %cst_31 = arith.constant -1.000000e+04 : f32
    %50 = vector.broadcast %cst_31 : f32 to vector<8x1xf32>
    %51 = arith.select %49, %47, %50 : vector<8x1xi1>, vector<8x1xf32>
    %cst_32 = arith.constant dense<0xFF800000> : vector<1xf32>
    %52 = vector.multi_reduction <maximumf>, %51, %cst_32 [0] : vector<8x1xf32> to vector<1xf32>
    %53 = vector.shape_cast %52 : vector<1xf32> to vector<1x1xf32>
    %54 = vector.broadcast %53 : vector<1x1xf32> to vector<8x1xf32>
    %55 = arith.subf %51, %54 : vector<8x1xf32>
    %56 = math.exp %55 : vector<8x1xf32>
    %cst_33 = arith.constant dense<0.000000e+00> : vector<1xf32>
    %57 = vector.multi_reduction <add>, %56, %cst_33 [0] : vector<8x1xf32> to vector<1xf32>
    %58 = vector.shape_cast %57 : vector<1xf32> to vector<1x1xf32>
    %59 = vector.broadcast %58 : vector<1x1xf32> to vector<8x1xf32>
    %60 = arith.divf %56, %59 : vector<8x1xf32>
    %61 = vector.broadcast %60 : vector<8x1xf32> to vector<8x32xf32>
    %62 = arith.mulf %33, %61 : vector<8x32xf32>
    %cst_34 = arith.constant dense<0.000000e+00> : vector<32xf32>
    %63 = vector.multi_reduction <add>, %62, %cst_34 [0] : vector<8x32xf32> to vector<32xf32>
    %64 = vector.shape_cast %63 : vector<32xf32> to vector<1x32xf32>
    %c0_35 = arith.constant 0 : index
    %c0_36 = arith.constant 0 : index
    %c0_37 = arith.constant 0 : index
    %65 = vector.load %arg9[%c0_35, %c0_36, %c0_37] : memref<1x1x32xf32, #tpu.memory_space<vmem>>, vector<1x1x32xf32>
    %66 = vector.shape_cast %65 : vector<1x1x32xf32> to vector<1x32xf32>
    %67 = vector.shape_cast %64 : vector<1x32xf32> to vector<1x1x32xf32>
    tpu.vector_store %arg9[%c0_35, %c0_36, %c0_37], %67 {strides = array<i32>} : memref<1x1x32xf32, #tpu.memory_space<vmem>>, vector<1x1x32xf32>,
    return
  }
  func.func @transform_0(%arg0: i32) -> (i32, i32, i32) {
    %c0_i32 = arith.constant 0 : i32
    %c0_i32_0 = arith.constant 0 : i32
    %c0_i32_1 = arith.constant 0 : i32
    return %arg0, %c0_i32, %c0_i32_0 : i32, i32, i32
  }
  func.func @transform_1(%arg0: i32) -> (i32, i32, i32) {
    %c0_i32 = arith.constant 0 : i32
    %c0_i32_0 = arith.constant 0 : i32
    %c0_i32_1 = arith.constant 0 : i32
    return %arg0, %c0_i32, %c0_i32_0 : i32, i32, i32
  }
  func.func @transform_2(%arg0: i32) -> (i32, i32) {
    %c0_i32 = arith.constant 0 : i32
    %c0_i32_0 = arith.constant 0 : i32
    %c0_i32_1 = arith.constant 0 : i32
    return %c0_i32, %c0_i32_0 : i32, i32
  }
  func.func @transform_3(%arg0: i32) -> (i32, i32) {
    %c0_i32 = arith.constant 0 : i32
    %c0_i32_0 = arith.constant 0 : i32
    %c0_i32_1 = arith.constant 0 : i32
    return %c0_i32, %c0_i32_0 : i32, i32
  }
  func.func @transform_4(%arg0: i32) -> (i32, i32) {
    %c0_i32 = arith.constant 0 : i32
    %c0_i32_0 = arith.constant 0 : i32
    %c0_i32_1 = arith.constant 0 : i32
    return %c0_i32, %c0_i32_0 : i32, i32
  }
  func.func @transform_5(%arg0: i32) -> (i32, i32) {
    %c0_i32 = arith.constant 0 : i32
    %c0_i32_0 = arith.constant 0 : i32
    %c0_i32_1 = arith.constant 0 : i32
    return %c0_i32, %c0_i32_0 : i32, i32
  }
  func.func @transform_6(%arg0: i32) -> (i32, i32) {
    %c0_i32 = arith.constant 0 : i32
    %c0_i32_0 = arith.constant 0 : i32
    %c0_i32_1 = arith.constant 0 : i32
    return %c0_i32, %c0_i32_0 : i32, i32
  }
  func.func @transform_7(%arg0: i32) -> (i32, i32) {
    %c0_i32 = arith.constant 0 : i32
    %c0_i32_0 = arith.constant 0 : i32
    %c0_i32_1 = arith.constant 0 : i32
    return %c0_i32, %c0_i32_0 : i32, i32
  }
  func.func @transform_8(%arg0: i32) -> (i32, i32, i32) {
    %c0_i32 = arith.constant 0 : i32
    %c0_i32_0 = arith.constant 0 : i32
    %c0_i32_1 = arith.constant 0 : i32
    return %arg0, %c0_i32, %c0_i32_0 : i32, i32, i32
  }
}

</mosaic_0001>

<llo_original>
// kernel: tpu_custom_call.1
$region0: #{tpu_custom_call.1}
  #allocation0 [shape = 'u32[]', space=smem, size = 0x4, offset = 0x4, fixed_abs, tag = 'smem constant byte address 0x4 - core index']
  #allocation1 [shape = 'u32[144,128]{1,0:T(1,128)}', space=vmem, size = 0x12000, scoped, tag = 'internal scratch']
  %s0 = inlined_call_operand.hbm [shape: f32[2,8,32], index: 0, kind: input, shape index: {}]
  %s1 = inlined_call_operand.vmem [shape: f32[2,8,1], index: 1, kind: input, shape index: {}]
  %s2 = inlined_call_operand.hbm [shape: f32[32,32], index: 2, kind: input, shape index: {}]
  %s3 = inlined_call_operand.vmem [shape: f32[1,32], index: 3, kind: input, shape index: {}]
  %s4 = inlined_call_operand.vmem [shape: f32[32,32], index: 4, kind: input, shape index: {}]
  %s5 = inlined_call_operand.vmem [shape: f32[1,32], index: 5, kind: input, shape index: {}]
  %s6 = inlined_call_operand.hbm [shape: f32[32,32], index: 6, kind: input, shape index: {}]
  %s7 = inlined_call_operand.vmem [shape: f32[1,32], index: 7, kind: input, shape index: {}]
  %s8 = inlined_call_operand.hbm [shape: f32[2,1,32], index: 8, kind: output, shape index: {}]
  %s9 = sld [smem:[#allocation0]]
  $region77: #{tpu_custom_call.1} parent=0
    _
  %s11 = ssub.s32 1, %s9
  %s12 = scalar_select 0, %s11, %s9
  $region1: #{tpu_custom_call.1} parent=0
    #allocation2 [shape = 'u8[8192]{0}', space=vmem, size = 0x2000, scoped, tag = 'input window, operand 0']
    #allocation3 [shape = 's32[2]{0}', space=sflag, size = 0x8, scoped, tag = 'scoped memory for tpu_custom_call.1']
    #allocation4 [shape = 's32[2]{0}', space=sflag, size = 0x8, scoped, tag = 'scoped memory for tpu_custom_call.1']
    #allocation5 [shape = 'u8[16384]{0}', space=vmem, size = 0x4000, scoped, tag = 'input window, operand 2, single buffered']
    #allocation6 [shape = 's32[1]{0}', space=sflag, size = 0x4, scoped, tag = 'scoped memory for tpu_custom_call.1']
    #allocation7 [shape = 'u8[16384]{0}', space=vmem, size = 0x4000, scoped, tag = 'input window, operand 6, single buffered']
    #allocation8 [shape = 'u8[1024]{0}', space=vmem, size = 0x400, scoped, tag = 'output window, operand 0']
    %13 = vsyncpa [#allocation3], 0
    %s14 = scalar_lea.sflag [#allocation3], 1
    %15 = vsyncpa %s14, 0
    %16 = vsyncpa [#allocation6], 0
    %17 = vsyncpa [#allocation4], 0
    %s18 = scalar_lea.sflag [#allocation4], 1
    %19 = vsyncpa %s18, 0
    loop: start=0, step=1, limit=4
    $region2: #{tpu_custom_call.1} parent=1 // loop_pre_header
      _
    $region3: #{tpu_custom_call.1} parent=1 // loop_header
      %s21 = sphi 0, %s25
      %p22 = scmp.ge.s32.totalorder %s21, 4
      %s31 = sphi 0, %s33
      %s34 = sphi 0, %s31
      %s35 = sphi 0, %s34
      %s51 = sphi 0, %s35
      %s57 = sphi 0, %s59
      %s60 = sphi 0, %s57
      %s61 = sphi 0, %s60
      %s77 = sphi 0, %s61
      %s81 = sphi 0, %s81
      %s83 = sphi 0, %s81
      %s84 = sphi 0, %s83
      %s98 = sphi 0, %s84
      %s102 = sphi 0, %s102
      %s104 = sphi 0, %s102
      %s105 = sphi 0, %s104
      %s119 = sphi 0, %s105
      %s123 = sphi 0, %s123
      %s125 = sphi 0, %s123
      %s126 = sphi 0, %s125
      %s140 = sphi 0, %s126
      %s144 = sphi 0, %s144
      %s146 = sphi 0, %s144
      %s147 = sphi 0, %s146
      %s161 = sphi 0, %s147
      %s165 = sphi 0, %s165
      %s167 = sphi 0, %s165
      %s168 = sphi 0, %s167
      %s182 = sphi 0, %s168
      %s186 = sphi 0, %s186
      %s188 = sphi 0, %s186
      %s189 = sphi 0, %s188
      %s203 = sphi 0, %s189
      %s209 = sphi 0, %s211
      %s212 = sphi 0, %s209
      %s213 = sphi 0, %s212
      %s229 = sphi 0, %s213
    $region4: #{tpu_custom_call.1} parent=1 // loop_header_branch
      %24 = sbr.rel (%p22) target = $region8
    $region5: #{tpu_custom_call.1} parent=1 // loop_body
      %s26 = ssub.s32 %s21, 1
      %s27 = ssub.s32 %s21, 2
      %s28 = sadd.s32 %s21, 1
      %s29 = ssub.s32 %s21, %s28
      %p30 = scmp.eq.s32.totalorder %s29, 0
      %s32 = sadd.s32 %s31, 1
      %s33 = scalar_select %p30, %s31, %s32
      %p36 = pneg %p30
      %p37 = scmp.eq.s32.totalorder %s21, 1
      %p38 = por %p36, %p37
      %p39 = scmp.ne.s32.totalorder %s31, %s34
      %p40 = scmp.eq.s32.totalorder %s21, 0
      %p41 = por %p39, %p40
      %p42 = scmp.ne.s32.totalorder %s31, %s34
      %p43 = scmp.eq.s32.totalorder %s26, 1
      %p44 = por %p42, %p43
      %p45 = scmp.ne.s32.totalorder %s34, %s35
      %p46 = scmp.eq.s32.totalorder %s26, 0
      %p47 = por %p45, %p46
      %p48 = scmp.ne.s32.totalorder %s34, %s35
      %p49 = scmp.eq.s32.totalorder %s27, 1
      %p50 = por %p48, %p49
      %p52 = scmp.ne.s32.totalorder %s35, %s51
      %p53 = scmp.eq.s32.totalorder %s27, 0
      %p54 = por %p52, %p53
      %s55 = ssub.s32 %s21, %s28
      %p56 = scmp.eq.s32.totalorder %s55, 0
      %s58 = sadd.s32 %s57, 1
      %s59 = scalar_select %p56, %s57, %s58
      %p62 = pneg %p56
      %p63 = scmp.eq.s32.totalorder %s21, 1
      %p64 = por %p62, %p63
      %p65 = scmp.ne.s32.totalorder %s57, %s60
      %p66 = scmp.eq.s32.totalorder %s21, 0
      %p67 = por %p65, %p66
      %p68 = scmp.ne.s32.totalorder %s57, %s60
      %p69 = scmp.eq.s32.totalorder %s26, 1
      %p70 = por %p68, %p69
      %p71 = scmp.ne.s32.totalorder %s60, %s61
      %p72 = scmp.eq.s32.totalorder %s26, 0
      %p73 = por %p71, %p72
      %p74 = scmp.ne.s32.totalorder %s60, %s61
      %p75 = scmp.eq.s32.totalorder %s27, 1
      %p76 = por %p74, %p75
      %p78 = scmp.ne.s32.totalorder %s61, %s77
      %p79 = scmp.eq.s32.totalorder %s27, 0
      %p80 = por %p78, %p79
      %s82 = sadd.s32 %s81, 1
      %p85 = scmp.eq.s32.totalorder %s21, 1
      %p86 = scmp.ne.s32.totalorder %s81, %s83
      %p87 = scmp.eq.s32.totalorder %s21, 0
      %p88 = por %p86, %p87
      %p89 = scmp.ne.s32.totalorder %s81, %s83
      %p90 = scmp.eq.s32.totalorder %s26, 1
      %p91 = por %p89, %p90
      %p92 = scmp.ne.s32.totalorder %s83, %s84
      %p93 = scmp.eq.s32.totalorder %s26, 0
      %p94 = por %p92, %p93
      %p95 = scmp.ne.s32.totalorder %s83, %s84
      %p96 = scmp.eq.s32.totalorder %s27, 1
      %p97 = por %p95, %p96
      %p99 = scmp.ne.s32.totalorder %s84, %s98
      %p100 = scmp.eq.s32.totalorder %s27, 0
      %p101 = por %p99, %p100
      %s103 = sadd.s32 %s102, 1
      %p106 = scmp.eq.s32.totalorder %s21, 1
      %p107 = scmp.ne.s32.totalorder %s102, %s104
      %p108 = scmp.eq.s32.totalorder %s21, 0
      %p109 = por %p107, %p108
      %p110 = scmp.ne.s32.totalorder %s102, %s104
      %p111 = scmp.eq.s32.totalorder %s26, 1
      %p112 = por %p110, %p111
      %p113 = scmp.ne.s32.totalorder %s104, %s105
      %p114 = scmp.eq.s32.totalorder %s26, 0
      %p115 = por %p113, %p114
      %p116 = scmp.ne.s32.totalorder %s104, %s105
      %p117 = scmp.eq.s32.totalorder %s27, 1
      %p118 = por %p116, %p117
      %p120 = scmp.ne.s32.totalorder %s105, %s119
      %p121 = scmp.eq.s32.totalorder %s27, 0
      %p122 = por %p120, %p121
      %s124 = sadd.s32 %s123, 1
      %p127 = scmp.eq.s32.totalorder %s21, 1
      %p128 = scmp.ne.s32.totalorder %s123, %s125
      %p129 = scmp.eq.s32.totalorder %s21, 0
      %p130 = por %p128, %p129
      %p131 = scmp.ne.s32.totalorder %s123, %s125
      %p132 = scmp.eq.s32.totalorder %s26, 1
      %p133 = por %p131, %p132
      %p134 = scmp.ne.s32.totalorder %s125, %s126
      %p135 = scmp.eq.s32.totalorder %s26, 0
      %p136 = por %p134, %p135
      %p137 = scmp.ne.s32.totalorder %s125, %s126
      %p138 = scmp.eq.s32.totalorder %s27, 1
      %p139 = por %p137, %p138
      %p141 = scmp.ne.s32.totalorder %s126, %s140
      %p142 = scmp.eq.s32.totalorder %s27, 0
      %p143 = por %p141, %p142
      %s145 = sadd.s32 %s144, 1
      %p148 = scmp.eq.s32.totalorder %s21, 1
      %p149 = scmp.ne.s32.totalorder %s144, %s146
      %p150 = scmp.eq.s32.totalorder %s21, 0
      %p151 = por %p149, %p150
      %p152 = scmp.ne.s32.totalorder %s144, %s146
      %p153 = scmp.eq.s32.totalorder %s26, 1
      %p154 = por %p152, %p153
      %p155 = scmp.ne.s32.totalorder %s146, %s147
      %p156 = scmp.eq.s32.totalorder %s26, 0
      %p157 = por %p155, %p156
      %p158 = scmp.ne.s32.totalorder %s146, %s147
      %p159 = scmp.eq.s32.totalorder %s27, 1
      %p160 = por %p158, %p159
      %p162 = scmp.ne.s32.totalorder %s147, %s161
      %p163 = scmp.eq.s32.totalorder %s27, 0
      %p164 = por %p162, %p163
      %s166 = sadd.s32 %s165, 1
      %p169 = scmp.eq.s32.totalorder %s21, 1
      %p170 = scmp.ne.s32.totalorder %s165, %s167
      %p171 = scmp.eq.s32.totalorder %s21, 0
      %p172 = por %p170, %p171
      %p173 = scmp.ne.s32.totalorder %s165, %s167
      %p174 = scmp.eq.s32.totalorder %s26, 1
      %p175 = por %p173, %p174
      %p176 = scmp.ne.s32.totalorder %s167, %s168
      %p177 = scmp.eq.s32.totalorder %s26, 0
      %p178 = por %p176, %p177
      %p179 = scmp.ne.s32.totalorder %s167, %s168
      %p180 = scmp.eq.s32.totalorder %s27, 1
      %p181 = por %p179, %p180
      %p183 = scmp.ne.s32.totalorder %s168, %s182
      %p184 = scmp.eq.s32.totalorder %s27, 0
      %p185 = por %p183, %p184
      %s187 = sadd.s32 %s186, 1
      %p190 = scmp.eq.s32.totalorder %s21, 1
      %p191 = scmp.ne.s32.totalorder %s186, %s188
      %p192 = scmp.eq.s32.totalorder %s21, 0
      %p193 = por %p191, %p192
      %p194 = scmp.ne.s32.totalorder %s186, %s188
      %p195 = scmp.eq.s32.totalorder %s26, 1
      %p196 = por %p194, %p195
      %p197 = scmp.ne.s32.totalorder %s188, %s189
      %p198 = scmp.eq.s32.totalorder %s26, 0
      %p199 = por %p197, %p198
      %p200 = scmp.ne.s32.totalorder %s188, %s189
      %p201 = scmp.eq.s32.totalorder %s27, 1
      %p202 = por %p200, %p201
      %p204 = scmp.ne.s32.totalorder %s189, %s203
      %p205 = scmp.eq.s32.totalorder %s27, 0
      %p206 = por %p204, %p205
      %s207 = ssub.s32 %s21, %s28
      %p208 = scmp.eq.s32.totalorder %s207, 0
      %s210 = sadd.s32 %s209, 1
      %s211 = scalar_select %p208, %s209, %s210
      %p214 = pneg %p208
      %p215 = scmp.eq.s32.totalorder %s21, 1
      %p216 = por %p214, %p215
      %p217 = scmp.ne.s32.totalorder %s209, %s212
      %p218 = scmp.eq.s32.totalorder %s21, 0
      %p219 = por %p217, %p218
      %p220 = scmp.ne.s32.totalorder %s209, %s212
      %p221 = scmp.eq.s32.totalorder %s26, 1
      %p222 = por %p220, %p221
      %p223 = scmp.ne.s32.totalorder %s212, %s213
      %p224 = scmp.eq.s32.totalorder %s26, 0
      %p225 = por %p223, %p224
      %p226 = scmp.ne.s32.totalorder %s212, %s213
      %p227 = scmp.eq.s32.totalorder %s27, 1
      %p228 = por %p226, %p227
      %p230 = scmp.ne.s32.totalorder %s213, %s229
      %p231 = scmp.eq.s32.totalorder %s27, 0
      %p232 = por %p230, %p231
      %p233 = scmp.le.s32.totalorder 1, %s21
      %p234 = scmp.lt.s32.totalorder %s21, 3
      %p235 = pnand %p233, %p234
      %p236 = pneg %p235
      // Predicated region
      $region9: #{tpu_custom_call.1} parent=5 // pred_check
        _
      $region10: #{tpu_custom_call.1} parent=5 // pred_check_branch
        %238 = sbr.rel (%p235) target = $region12
      $region11: #{tpu_custom_call.1} parent=5 // pred_region
        %s239 = ssub.s32 %s21, 1
        // Predicated region
        $region13: #{tpu_custom_call.1} parent=11 // pred_check
          %p240 = pneg %p94
        $region14: #{tpu_custom_call.1} parent=11 // pred_check_branch
          %242 = sbr.rel (%p240) target = $region16
        $region15: #{tpu_custom_call.1} parent=11 // pred_region
          %s244 = ssub.s32 512, 512
          %245 = vsyncadd [#allocation6], %s244
          %s246 = sshll.u32 [#allocation5], 4
          %s247 = int_to_ptr.vmem [resolvable:$true] %s246
          %252 = dma.hbm_to_vmem [thread:$0]  %s2, 512, %s247, [#allocation6], 128, 128, 8
        $region16: #{tpu_custom_call.1} parent=11 // pred_fallthru
          _
        // Predicated region
        $region17: #{tpu_custom_call.1} parent=11 // pred_check
          %p253 = pneg %p115
        $region18: #{tpu_custom_call.1} parent=11 // pred_check_branch
          %255 = sbr.rel (%p253) target = $region20
        $region19: #{tpu_custom_call.1} parent=11 // pred_region
          _
        $region20: #{tpu_custom_call.1} parent=11 // pred_fallthru
          _
        // Predicated region
        $region21: #{tpu_custom_call.1} parent=11 // pred_check
          %p256 = pneg %p136
        $region22: #{tpu_custom_call.1} parent=11 // pred_check_branch
          %258 = sbr.rel (%p256) target = $region24
        $region23: #{tpu_custom_call.1} parent=11 // pred_region
          _
        $region24: #{tpu_custom_call.1} parent=11 // pred_fallthru
          _
        // Predicated region
        $region25: #{tpu_custom_call.1} parent=11 // pred_check
          %p259 = pneg %p157
        $region26: #{tpu_custom_call.1} parent=11 // pred_check_branch
          %261 = sbr.rel (%p259) target = $region28
        $region27: #{tpu_custom_call.1} parent=11 // pred_region
          _
        $region28: #{tpu_custom_call.1} parent=11 // pred_fallthru
          _
        // Predicated region
        $region29: #{tpu_custom_call.1} parent=11 // pred_check
          %p262 = pneg %p178
        $region30: #{tpu_custom_call.1} parent=11 // pred_check_branch
          %264 = sbr.rel (%p262) target = $region32
        $region31: #{tpu_custom_call.1} parent=11 // pred_region
          %s266 = ssub.s32 512, 512
          %267 = vsyncadd [#allocation6], %s266
          %s268 = sshll.u32 [#allocation7], 4
          %s269 = int_to_ptr.vmem [resolvable:$true] %s268
          %274 = dma.hbm_to_vmem [thread:$0]  %s6, 512, %s269, [#allocation6], 128, 128, 8
        $region32: #{tpu_custom_call.1} parent=11 // pred_fallthru
          _
        // Predicated region
        $region33: #{tpu_custom_call.1} parent=11 // pred_check
          %p275 = pneg %p199
        $region34: #{tpu_custom_call.1} parent=11 // pred_check_branch
          %277 = sbr.rel (%p275) target = $region36
        $region35: #{tpu_custom_call.1} parent=11 // pred_region
          _
        $region36: #{tpu_custom_call.1} parent=11 // pred_fallthru
          _
      $region12: #{tpu_custom_call.1} parent=5 // pred_fallthru
        _
      %p278 = scmp.lt.s32.totalorder %s21, 2
      // Predicated region
      $region37: #{tpu_custom_call.1} parent=5 // pred_check
        %p279 = pneg %p278
      $region38: #{tpu_custom_call.1} parent=5 // pred_check_branch
        %281 = sbr.rel (%p279) target = $region40
      $region39: #{tpu_custom_call.1} parent=5 // pred_region
        // Predicated region
        $region41: #{tpu_custom_call.1} parent=39 // pred_check
          %p282 = pneg %p41
        $region42: #{tpu_custom_call.1} parent=39 // pred_check_branch
          %284 = sbr.rel (%p282) target = $region44
        $region43: #{tpu_custom_call.1} parent=39 // pred_region
          %s285 = sand.u32 %s31, 1
          %s286 = scalar_lea.sflag [#allocation3], %s285
          %s287 = sand.u32 %s31, 1
          %s288 = smul.addr %s287, 8
          %s289 = scalar_lea.vmem [#allocation2], %s288
          %s291 = ssub.s32 128, 128
          %292 = vsyncadd %s286, %s291
          %s293 = smul.addr %s21, 128
          %s294 = scalar_lea.hbm %s0, %s293
          %s296 = sshll.u32 %s289, 4
          %s297 = int_to_ptr.vmem [resolvable:$true] %s296
          %299 = dma.hbm_to_vmem [thread:$0]  %s294, 128, %s297, %s286
        $region44: #{tpu_custom_call.1} parent=39 // pred_fallthru
          _
        // Predicated region
        $region45: #{tpu_custom_call.1} parent=39 // pred_check
          %p300 = pneg %p67
        $region46: #{tpu_custom_call.1} parent=39 // pred_check_branch
          %302 = sbr.rel (%p300) target = $region48
        $region47: #{tpu_custom_call.1} parent=39 // pred_region
          %p303 = scmp.lt.s32.totalorder %s21, 1
          %s304 = scalar_select %p303, %s21, 1
          %s305 = smul.addr %s304, 8
          %s306 = scalar_lea.vmem %s1, %s305
        $region48: #{tpu_custom_call.1} parent=39 // pred_fallthru
          _
      $region40: #{tpu_custom_call.1} parent=5 // pred_fallthru
        _
      %p307 = scmp.le.s32.totalorder 1, %s21
      %p308 = scmp.lt.s32.totalorder %s21, 3
      %p309 = pnand %p307, %p308
      %p310 = pneg %p309
      // Predicated region
      $region49: #{tpu_custom_call.1} parent=5 // pred_check
        _
      $region50: #{tpu_custom_call.1} parent=5 // pred_check_branch
        %312 = sbr.rel (%p309) target = $region52
      $region51: #{tpu_custom_call.1} parent=5 // pred_region
        %s313 = ssub.s32 %s21, 1
        %s314 = sand.u32 %s34, 1
        %s315 = scalar_lea.sflag [#allocation3], %s314
        %s316 = sand.u32 %s34, 1
        %s317 = smul.addr %s316, 8
        %s318 = scalar_lea.vmem [#allocation2], %s317
        // Predicated region
        $region53: #{tpu_custom_call.1} parent=51 // pred_check
          %p319 = pneg %p47
        $region54: #{tpu_custom_call.1} parent=51 // pred_check_branch
          %321 = sbr.rel (%p319) target = $region56
        $region55: #{tpu_custom_call.1} parent=51 // pred_region
          %322 = dma.done %s315, 128
        $region56: #{tpu_custom_call.1} parent=51 // pred_fallthru
          _
        // Predicated region
        $region57: #{tpu_custom_call.1} parent=51 // pred_check
          %p323 = pneg %p94
        $region58: #{tpu_custom_call.1} parent=51 // pred_check_branch
          %325 = sbr.rel (%p323) target = $region60
        $region59: #{tpu_custom_call.1} parent=51 // pred_region
          %326 = dma.done [#allocation6], 512
        $region60: #{tpu_custom_call.1} parent=51 // pred_fallthru
          _
        // Predicated region
        $region61: #{tpu_custom_call.1} parent=51 // pred_check
          %p327 = pneg %p178
        $region62: #{tpu_custom_call.1} parent=51 // pred_check_branch
          %329 = sbr.rel (%p327) target = $region64
        $region63: #{tpu_custom_call.1} parent=51 // pred_region
          %330 = dma.done [#allocation6], 512
        $region64: #{tpu_custom_call.1} parent=51 // pred_fallthru
          _
        %s331 = sand.u32 %s34, 1
        %s332 = scalar_lea.sflag [#allocation3], %s331
        %s333 = sand.u32 %s34, 1
        %s334 = smul.addr %s333, 8
        %s335 = scalar_lea.vmem [#allocation2], %s334
        %p336 = pneg %p47
        %p337 = pneg %p44
        %p338 = scmp.lt.s32.totalorder %s26, 1
        %s339 = scalar_select %p338, %s26, 1
        %s340 = smul.addr %s339, 8
        %s341 = scalar_lea.vmem %s1, %s340
        %p342 = pneg %p73
        %p343 = pneg %p70
        %p344 = pneg %p94
        %p345 = pneg %p91
        %p346 = pneg %p115
        %p347 = pneg %p112
        %p348 = pneg %p136
        %p349 = pneg %p133
        %p350 = pneg %p157
        %p351 = pneg %p154
        %p352 = pneg %p178
        %p353 = pneg %p175
        %p354 = pneg %p199
        %p355 = pneg %p196
        %p356 = pneg %p225
        %p357 = pneg %p222
        %s358 = sand.u32 %s212, 1
        %s359 = scalar_lea.sflag [#allocation4], %s358
        %s360 = sand.u32 %s212, 1
        %s361 = scalar_lea.vmem [#allocation8], %s360
        %p362 = scmp.lt.s32.totalorder %s26, 1
        %s363 = scalar_select %p362, %s26, 1
        %s364 = smul.addr %s363, 8
        %s365 = scalar_lea.vmem %s1, %s364
        %v366 = vld [vmem:[%s318] sm:$0xff]
        %v367 = vld [vmem:[%s365] sm:$0xff]
        %v368 = vld [vmem:[#allocation5] sm:$0xff]
        %v369 = vld [vmem:[#allocation5 + $0x8] sm:$0xff]
        %v370 = vld [vmem:[#allocation5 + $0x10] sm:$0xff]
        %v371 = vld [vmem:[#allocation5 + $0x18] sm:$0xff]
        %v372 = vld [vmem:[%s3] sm:$0x1]
        %v374 = vlaneseq
        %v375 = vshrl.u32 %v374, 7
        %v376 = vsub.s32 0, %v375
        %v377 = vrot.slane %v372, %v376
        %vm379 = vcmask 261120
        %v381 = vsel %vm379, %v366, 0
        %383 = vmatprep.subr.mxu0 0.0
        %384 = vmatpush1.msra.mxu0 %v368
        %385 = vmatprep.subr.mxu0 0.0
        %386 = vmatpush1.msra.mxu0 %v369
        %387 = vmatprep.subr.mxu0 0.0
        %388 = vmatpush1.msra.mxu0 %v370
        %389 = vmatprep.subr.mxu0 0.0
        %390 = vmatpush1.msra.mxu0 %v371
        %391 = vmatprep.subr.mxu0 0.0
        %392 = vmatpush1.msra.mxu0 0.0
        %393 = vmatprep.subr.mxu0 0.0
        %394 = vmatpush1.msra.mxu0 0.0
        %395 = vmatprep.subr.mxu0 0.0
        %396 = vmatpush1.msra.mxu0 0.0
        %397 = vmatprep.subr.mxu0 0.0
        %398 = vmatpush1.msra.mxu0 0.0
        %399 = vmatprep.subr.mxu0 0.0
        %400 = vmatpush1.msra.mxu0 0.0
        %401 = vmatprep.subr.mxu0 0.0
        %402 = vmatpush1.msra.mxu0 0.0
        %403 = vmatprep.subr.mxu0 0.0
        %404 = vmatpush1.msra.mxu0 0.0
        %405 = vmatprep.subr.mxu0 0.0
        %406 = vmatpush1.msra.mxu0 0.0
        %407 = vmatprep.subr.mxu0 0.0
        %408 = vmatpush1.msra.mxu0 0.0
        %409 = vmatprep.subr.mxu0 0.0
        %410 = vmatpush1.msra.mxu0 0.0
        %411 = vmatprep.subr.mxu0 0.0
        %412 = vmatpush1.msra.mxu0 0.0
        %413 = vmatprep.subr.mxu0 0.0
        %414 = vmatpush1.msra.mxu0 0.0
        %415 = vmatprep.subr.mxu0 0.0
        %416 = vmatpush1.msra.mxu0 0.0
        %417 = vmatprep.subr.mxu0 0.0
        %418 = vmatpush1.msra.mxu0 0.0
        %419 = vmatprep.subr.mxu0 0.0
        %420 = vmatpush1.msra.mxu0 0.0
        %421 = vmatprep.subr.mxu0 0.0
        %422 = vmatpush1.msra.mxu0 0.0
        %423 = vmatprep.subr.mxu0 0.0
        %424 = vmatpush1.msra.mxu0 0.0
        %425 = vmatprep.subr.mxu0 0.0
        %426 = vmatpush1.msra.mxu0 0.0
        %427 = vmatprep.subr.mxu0 0.0
        %428 = vmatpush1.msra.mxu0 0.0
        %429 = vmatprep.subr.mxu0 0.0
        %430 = vmatpush1.msra.mxu0 0.0
        %431 = vmatprep.subr.mxu0 0.0
        %432 = vmatpush1.msra.mxu0 0.0
        %433 = vmatprep.subr.mxu0 0.0
        %434 = vmatpush1.msra.mxu0 0.0
        %435 = vmatprep.subr.mxu0 0.0
        %436 = vmatpush1.msra.mxu0 0.0
        %437 = vmatprep.subr.mxu0 0.0
        %438 = vmatpush1.msra.mxu0 0.0
        %439 = vmatprep.subr.mxu0 0.0
        %440 = vmatpush1.msra.mxu0 0.0
        %441 = vmatprep.subr.mxu0 0.0
        %442 = vmatpush1.msra.mxu0 0.0
        %443 = vmatprep.subr.mxu0 0.0
        %444 = vmatpush1.msra.mxu0 0.0
        %445 = vmatprep.subr.mxu0 0.0
        %446 = vmatpush1.msra.mxu0 0.0
        %447 = vmatprep.mubr.f32.mxu0 0.0
        %448 = vmatmul.mubr.f32.gmra.mrb[0].mxu0 %v381
        %v449 = vpop.f32.mrb[0].mxu0
        %v450 = vadd.f32 %v377, %v449
        %v451 = vpop.f32.mrb[0].mxu0
        %452 = vdwg.mxu0
        %vm453 = vcmp.gt.f32.partialorder %v450, 0.0
        %v454 = vmul.f32 %v450, 0.01
        %v455 = vsel %vm453, %v450, %v454
        %v456 = vld [vmem:[%s4] sm:$0xff]
        %v457 = vld [vmem:[%s4 + $0x8] sm:$0xff]
        %v458 = vld [vmem:[%s4 + $0x10] sm:$0xff]
        %v459 = vld [vmem:[%s4 + $0x18] sm:$0xff]
        %v460 = vld [vmem:[%s5] sm:$0x1]
        %v462 = vlaneseq
        %v463 = vshrl.u32 %v462, 7
        %v464 = vsub.s32 0, %v463
        %v465 = vrot.slane %v460, %v464
        %v468 = vsel %vm379, %v455, 0
        %470 = vmatprep.subr.mxu0 0.0
        %471 = vmatpush1.msra.mxu0 %v456
        %472 = vmatprep.subr.mxu0 0.0
        %473 = vmatpush1.msra.mxu0 %v457
        %474 = vmatprep.subr.mxu0 0.0
        %475 = vmatpush1.msra.mxu0 %v458
        %476 = vmatprep.subr.mxu0 0.0
        %477 = vmatpush1.msra.mxu0 %v459
        %478 = vmatprep.subr.mxu0 0.0
        %479 = vmatpush1.msra.mxu0 0.0
        %480 = vmatprep.subr.mxu0 0.0
        %481 = vmatpush1.msra.mxu0 0.0
        %482 = vmatprep.subr.mxu0 0.0
        %483 = vmatpush1.msra.mxu0 0.0
        %484 = vmatprep.subr.mxu0 0.0
        %485 = vmatpush1.msra.mxu0 0.0
        %486 = vmatprep.subr.mxu0 0.0
        %487 = vmatpush1.msra.mxu0 0.0
        %488 = vmatprep.subr.mxu0 0.0
        %489 = vmatpush1.msra.mxu0 0.0
        %490 = vmatprep.subr.mxu0 0.0
        %491 = vmatpush1.msra.mxu0 0.0
        %492 = vmatprep.subr.mxu0 0.0
        %493 = vmatpush1.msra.mxu0 0.0
        %494 = vmatprep.subr.mxu0 0.0
        %495 = vmatpush1.msra.mxu0 0.0
        %496 = vmatprep.subr.mxu0 0.0
        %497 = vmatpush1.msra.mxu0 0.0
        %498 = vmatprep.subr.mxu0 0.0
        %499 = vmatpush1.msra.mxu0 0.0
        %500 = vmatprep.subr.mxu0 0.0
        %501 = vmatpush1.msra.mxu0 0.0
        %502 = vmatprep.subr.mxu0 0.0
        %503 = vmatpush1.msra.mxu0 0.0
        %504 = vmatprep.subr.mxu0 0.0
        %505 = vmatpush1.msra.mxu0 0.0
        %506 = vmatprep.subr.mxu0 0.0
        %507 = vmatpush1.msra.mxu0 0.0
        %508 = vmatprep.subr.mxu0 0.0
        %509 = vmatpush1.msra.mxu0 0.0
        %510 = vmatprep.subr.mxu0 0.0
        %511 = vmatpush1.msra.mxu0 0.0
        %512 = vmatprep.subr.mxu0 0.0
        %513 = vmatpush1.msra.mxu0 0.0
        %514 = vmatprep.subr.mxu0 0.0
        %515 = vmatpush1.msra.mxu0 0.0
        %516 = vmatprep.subr.mxu0 0.0
        %517 = vmatpush1.msra.mxu0 0.0
        %518 = vmatprep.subr.mxu0 0.0
        %519 = vmatpush1.msra.mxu0 0.0
        %520 = vmatprep.subr.mxu0 0.0
        %521 = vmatpush1.msra.mxu0 0.0
        %522 = vmatprep.subr.mxu0 0.0
        %523 = vmatpush1.msra.mxu0 0.0
        %524 = vmatprep.subr.mxu0 0.0
        %525 = vmatpush1.msra.mxu0 0.0
        %526 = vmatprep.subr.mxu0 0.0
        %527 = vmatpush1.msra.mxu0 0.0
        %528 = vmatprep.subr.mxu0 0.0
        %529 = vmatpush1.msra.mxu0 0.0
        %530 = vmatprep.subr.mxu0 0.0
        %531 = vmatpush1.msra.mxu0 0.0
        %532 = vmatprep.subr.mxu0 0.0
        %533 = vmatpush1.msra.mxu0 0.0
        %534 = vmatprep.mubr.f32.mxu0 0.0
        %535 = vmatmul.mubr.f32.gmra.mrb[0].mxu0 %v468
        %v536 = vpop.f32.mrb[0].mxu0
        %v537 = vadd.f32 %v465, %v536
        %v538 = vpop.f32.mrb[0].mxu0
        %539 = vdwg.mxu0
        %vm540 = vcmp.gt.f32.partialorder %v537, 0.0
        %v541 = vmul.f32 %v537, 0.01
        %v542 = vsel %vm540, %v537, %v541
        %v543 = vld [vmem:[#allocation7] sm:$0xff]
        %v544 = vld [vmem:[#allocation7 + $0x8] sm:$0xff]
        %v545 = vld [vmem:[#allocation7 + $0x10] sm:$0xff]
        %v546 = vld [vmem:[#allocation7 + $0x18] sm:$0xff]
        %v547 = vld [vmem:[%s7] sm:$0x1]
        %v549 = vlaneseq
        %v550 = vshrl.u32 %v549, 7
        %v551 = vsub.s32 0, %v550
        %v552 = vrot.slane %v547, %v551
        %v555 = vsel %vm379, %v542, 0
        %557 = vmatprep.subr.mxu0 0.0
        %558 = vmatpush1.msra.mxu0 %v543
        %559 = vmatprep.subr.mxu0 0.0
        %560 = vmatpush1.msra.mxu0 %v544
        %561 = vmatprep.subr.mxu0 0.0
        %562 = vmatpush1.msra.mxu0 %v545
        %563 = vmatprep.subr.mxu0 0.0
        %564 = vmatpush1.msra.mxu0 %v546
        %565 = vmatprep.subr.mxu0 0.0
        %566 = vmatpush1.msra.mxu0 0.0
        %567 = vmatprep.subr.mxu0 0.0
        %568 = vmatpush1.msra.mxu0 0.0
        %569 = vmatprep.subr.mxu0 0.0
        %570 = vmatpush1.msra.mxu0 0.0
        %571 = vmatprep.subr.mxu0 0.0
        %572 = vmatpush1.msra.mxu0 0.0
        %573 = vmatprep.subr.mxu0 0.0
        %574 = vmatpush1.msra.mxu0 0.0
        %575 = vmatprep.subr.mxu0 0.0
        %576 = vmatpush1.msra.mxu0 0.0
        %577 = vmatprep.subr.mxu0 0.0
        %578 = vmatpush1.msra.mxu0 0.0
        %579 = vmatprep.subr.mxu0 0.0
        %580 = vmatpush1.msra.mxu0 0.0
        %581 = vmatprep.subr.mxu0 0.0
        %582 = vmatpush1.msra.mxu0 0.0
        %583 = vmatprep.subr.mxu0 0.0
        %584 = vmatpush1.msra.mxu0 0.0
        %585 = vmatprep.subr.mxu0 0.0
        %586 = vmatpush1.msra.mxu0 0.0
        %587 = vmatprep.subr.mxu0 0.0
        %588 = vmatpush1.msra.mxu0 0.0
        %589 = vmatprep.subr.mxu0 0.0
        %590 = vmatpush1.msra.mxu0 0.0
        %591 = vmatprep.subr.mxu0 0.0
        %592 = vmatpush1.msra.mxu0 0.0
        %593 = vmatprep.subr.mxu0 0.0
        %594 = vmatpush1.msra.mxu0 0.0
        %595 = vmatprep.subr.mxu0 0.0
        %596 = vmatpush1.msra.mxu0 0.0
        %597 = vmatprep.subr.mxu0 0.0
        %598 = vmatpush1.msra.mxu0 0.0
        %599 = vmatprep.subr.mxu0 0.0
        %600 = vmatpush1.msra.mxu0 0.0
        %601 = vmatprep.subr.mxu0 0.0
        %602 = vmatpush1.msra.mxu0 0.0
        %603 = vmatprep.subr.mxu0 0.0
        %604 = vmatpush1.msra.mxu0 0.0
        %605 = vmatprep.subr.mxu0 0.0
        %606 = vmatpush1.msra.mxu0 0.0
        %607 = vmatprep.subr.mxu0 0.0
        %608 = vmatpush1.msra.mxu0 0.0
        %609 = vmatprep.subr.mxu0 0.0
        %610 = vmatpush1.msra.mxu0 0.0
        %611 = vmatprep.subr.mxu0 0.0
        %612 = vmatpush1.msra.mxu0 0.0
        %613 = vmatprep.subr.mxu0 0.0
        %614 = vmatpush1.msra.mxu0 0.0
        %615 = vmatprep.subr.mxu0 0.0
        %616 = vmatpush1.msra.mxu0 0.0
        %617 = vmatprep.subr.mxu0 0.0
        %618 = vmatpush1.msra.mxu0 0.0
        %619 = vmatprep.subr.mxu0 0.0
        %620 = vmatpush1.msra.mxu0 0.0
        %621 = vmatprep.mubr.f32.mxu0 0.0
        %622 = vmatmul.mubr.f32.gmra.mrb[0].mxu0 %v555
        %v623 = vpop.f32.mrb[0].mxu0
        %v624 = vadd.f32 %v552, %v623
        %v625 = vpop.f32.mrb[0].mxu0
        %626 = vdwg.mxu0
        %vm627 = vcmp.gt.f32.partialorder %v624, 0.0
        %v628 = vmul.f32 %v624, 0.01
        %v629 = vsel %vm627, %v624, %v628
        %vm630 = vcmask 7168
        %v631 = vsel %vm630, %v367, 0.0
        %v632 = vrot.slane %v631, 4
        %v633 = vadd.f32 %v631, %v632
        %v634 = vrot.slane %v633, 2
        %v635 = vadd.f32 %v633, %v634
        %v636 = vrot.slane %v635, 1
        %v637 = vadd.f32 %v635, %v636
        %v638 = vsel %vm379, %v629, 0.0
        %v639 = vrot.slane %v638, 4
        %v640 = vadd.f32 %v638, %v639
        %v641 = vrot.slane %v640, 2
        %v642 = vadd.f32 %v640, %v641
        %v643 = vrot.slane %v642, 1
        %v644 = vadd.f32 %v642, %v643
        %v645 = vadd.f32 %v637, 1e-05
        %647 = vset.pattern.permute.xlu0 0
        %648 = vperm.xlu0 %647, %v645
        %v649 = vpop.permute.xlu0 %648
        %v651 = vrcp.pop %v649
        %v652 = vmul.f32 %v644, %v651
        %v653 = vmul.f32 %v629, %v652
        %v654 = vsel %vm379, %v653, 0.0
        %655 = vadd.xlane.f32.xlu0 %v654
        %v656 = vpop.xlane.xlu0 %655
        %v657 = vmul.f32 %v656, 0.17677669
        %vm658 = vcmp.gt.f32.partialorder %v367, 0.0
        %v659 = vsel %vm658, %v657, -10000.0
        %v660 = vsel %vm630, %v659, -inf
        %v661 = vrot.slane %v660, 4
        %v662 = vmax.f32 %v660, %v661
        %v663 = vrot.slane %v662, 2
        %v664 = vmax.f32 %v662, %v663
        %v665 = vrot.slane %v664, 1
        %v666 = vmax.f32 %v664, %v665
        %v667 = vsub.f32 %v659, %v666
        %v668 = vmul.f32 %v667, 1.442695
        %v669 = vpow.pop %v668
        %v670 = vsel %vm630, %v669, 0.0
        %v671 = vrot.slane %v670, 4
        %v672 = vadd.f32 %v670, %v671
        %v673 = vrot.slane %v672, 2
        %v674 = vadd.f32 %v672, %v673
        %v675 = vrot.slane %v674, 1
        %v676 = vadd.f32 %v674, %v675
        %v677 = vrcp.pop %v676
        %v678 = vmul.f32 %v669, %v677
        %680 = vset.pattern.permute.xlu0 0
        %681 = vperm.xlu0 %680, %v678
        %v682 = vpop.permute.xlu0 %681
        %v684 = vmul.f32 %v629, %v682
        %v685 = vsel %vm379, %v684, 0.0
        %v686 = vrot.slane %v685, 4
        %v687 = vadd.f32 %v685, %v686
        %v688 = vrot.slane %v687, 2
        %v689 = vadd.f32 %v687, %v688
        %v690 = vrot.slane %v689, 1
        %v691 = vadd.f32 %v689, %v690
        %vm692 = vcmask 253952
        %693 = vst.msk [vmem:[%s361] sm:$0x1] %vm692, %v691
        %s694 = sand.u32 %s212, 1
        %s695 = scalar_lea.sflag [#allocation4], %s694
        %s696 = sand.u32 %s212, 1
        %s697 = scalar_lea.vmem [#allocation8], %s696
        // Predicated region
        $region65: #{tpu_custom_call.1} parent=51 // pred_check
          %p698 = pneg %p222
        $region66: #{tpu_custom_call.1} parent=51 // pred_check_branch
          %700 = sbr.rel (%p698) target = $region68
        $region67: #{tpu_custom_call.1} parent=51 // pred_region
          %s702 = ssub.s32 16, 16
          %703 = vsyncadd %s695, %s702
          %s704 = smul.addr %s26, 16
          %s705 = scalar_lea.hbm %s8, %s704
          %s707 = sshll.u32 %s697, 4
          %s708 = int_to_ptr.vmem [resolvable:$true] %s707
          %710 = dma.vmem_to_hbm [thread:$0]  %s708, 16, %s705, %s695
        $region68: #{tpu_custom_call.1} parent=51 // pred_fallthru
          _
      $region52: #{tpu_custom_call.1} parent=5 // pred_fallthru
        _
      %p711 = scmp.le.s32.totalorder 2, %s21
      // Predicated region
      $region69: #{tpu_custom_call.1} parent=5 // pred_check
        %p712 = pneg %p711
      $region70: #{tpu_custom_call.1} parent=5 // pred_check_branch
        %714 = sbr.rel (%p712) target = $region72
      $region71: #{tpu_custom_call.1} parent=5 // pred_region
        %s715 = ssub.s32 %s21, 2
        // Predicated region
        $region73: #{tpu_custom_call.1} parent=71 // pred_check
          %p716 = pneg %p228
        $region74: #{tpu_custom_call.1} parent=71 // pred_check_branch
          %718 = sbr.rel (%p716) target = $region76
        $region75: #{tpu_custom_call.1} parent=71 // pred_region
          %s719 = sand.u32 %s213, 1
          %s720 = scalar_lea.sflag [#allocation4], %s719
          %s721 = sand.u32 %s213, 1
          %s722 = scalar_lea.vmem [#allocation8], %s721
          %723 = dma.done %s720, 16
        $region76: #{tpu_custom_call.1} parent=71 // pred_fallthru
          _
      $region72: #{tpu_custom_call.1} parent=5 // pred_fallthru
        _
    $region6: #{tpu_custom_call.1} parent=1 // loop_footer
      %s25 = sadd.s32 1, %s21
    $region7: #{tpu_custom_call.1} parent=1 // loop_footer_branch
      %20 = sbr.rel target = $region3
    $region8: #{tpu_custom_call.1} parent=1 // loop_exit
      _
    %724 = vsyncpa [#allocation3], 1
    %s725 = scalar_lea.sflag [#allocation3], 1
    %726 = vsyncpa %s725, 1
    %727 = vsyncpa [#allocation6], 1
    %728 = vsyncpa [#allocation4], 1
    %s729 = scalar_lea.sflag [#allocation4], 1
    %730 = vsyncpa %s729, 1

</llo_original>
